<compile_context>
chip_gen: v5e
topology: v5e:2x2
jax: 0.10.0
libtpu: 0.0.40
codegen_flags: <defaults>
</compile_context>

<pallas_src>
import jax
import jax.numpy as jnp
from jax.experimental import pallas as pl
from jax.experimental.pallas import tpu as pltpu

FEATURE_DIM = 6
NUM_EXPERTS = 2
EMBED_DIM = NUM_EXPERTS * FEATURE_DIM   # 12
NUM_HEADS = FEATURE_DIM                 # 6
HEAD_DIM = EMBED_DIM // NUM_HEADS       # 2

FEAT_COLS = 16           # [mri_f(6) | dna_f(6) | gate_logit_diff(1) | pad(3)]
MRI_OUT_DIM = 4
DNA_OUT_DIM = 7
BT_MAX = 2048            # batch tile cap: ~17 MiB double-buffered -> fits v7x 64 MiB VMEM
VMEM_LIMIT_BYTES = 48 * 1024 * 1024


def multimodal_kernel(mri_ref, dna_ref, wm_ref, wd_ref, slab_ref,
                      mri_out_ref, dna_out_ref):
    f32 = jnp.float32
    # Fused matmul #1: per-modality feature extraction + gate-logit-difference column.
    feats = (jnp.dot(mri_ref[...], wm_ref[...], preferred_element_type=f32)
             + jnp.dot(dna_ref[...], wd_ref[...], preferred_element_type=f32)
             + slab_ref[0:1, 0:FEAT_COLS])                       # (bt, 16)
    mri_f = feats[:, 0:FEATURE_DIM]                              # (bt, 6)
    dna_f = feats[:, FEATURE_DIM:2 * FEATURE_DIM]                # (bt, 6)
    d = feats[:, 2 * FEATURE_DIM:2 * FEATURE_DIM + 1]            # logits1 - logits0

    # 2-way softmax in sigmoid form: no cross-lane reductions; exp/recip go to the EUP.
    g0 = pl.reciprocal(1.0 + jnp.exp(d), approx=False)           # gate for MRI expert
    combined = g0 * mri_f + (1.0 - g0) * dna_f                   # (bt, 6)

    # Fused matmul #2: packed fc2 head [mri_out(4) | dna_out(7) | pad] then split stores.
    head = (jnp.dot(combined, slab_ref[1:1 + FEATURE_DIM, 0:FEAT_COLS],
                    preferred_element_type=f32)
            + slab_ref[1 + FEATURE_DIM:2 + FEATURE_DIM, 0:FEAT_COLS])   # (bt, 16)
    mri_out_ref[...] = head[:, 0:MRI_OUT_DIM]
    dna_out_ref[...] = head[:, MRI_OUT_DIM:MRI_OUT_DIM + DNA_OUT_DIM]


def _pack_params(p):
    """Wrapper-side weight fusion/packing (constant-foldable plain JAX)."""
    f32 = jnp.float32
    mri_w = p["mri_w"].astype(f32)       # (6, MRI_FLAT)
    dna_w = p["dna_w"].astype(f32)       # (6, SEQ)
    mri_flat = mri_w.shape[1]
    seq = dna_w.shape[1]

    # Attention V projection; Q/K cancel exactly on a length-1 sequence.
    wv = p["in_proj_w"][2 * EMBED_DIM:3 * EMBED_DIM, :].astype(f32)   # (12, 12)
    bv = p["in_proj_b"][2 * EMBED_DIM:3 * EMBED_DIM].astype(f32)
    wo = p["out_proj_w"].astype(f32)
    bo = p["out_proj_b"].astype(f32)
    wg = p["gate_w"].astype(f32)
    bg = p["gate_b"].astype(f32)

    # Fold V -> out_proj -> fc_gate into one (12, 2) + bias, then take the logit diff.
    w_chain = wv.T @ wo.T @ wg.T                       # (12, 2)
    b_chain = (bv @ wo.T + bo) @ wg.T + bg             # (2,)
    w_diff = w_chain[:, 1] - w_chain[:, 0]             # (12,)
    b_diff = b_chain[1] - b_chain[0]

    # Per-modality feature weights with the fused gate-diff column in lane 12.
    wfeat_mri = jnp.zeros((mri_flat, FEAT_COLS), f32)
    wfeat_mri = wfeat_mri.at[:, 0:FEATURE_DIM].set(mri_w.T)
    wfeat_mri = wfeat_mri.at[:, 2 * FEATURE_DIM].set(
        mri_w.T @ w_diff[0:FEATURE_DIM])

    wfeat_dna = jnp.zeros((seq, FEAT_COLS), f32)
    wfeat_dna = wfeat_dna.at[:, FEATURE_DIM:2 * FEATURE_DIM].set(dna_w.T)
    wfeat_dna = wfeat_dna.at[:, 2 * FEATURE_DIM].set(
        dna_w.T @ w_diff[FEATURE_DIM:2 * FEATURE_DIM])

    b_feat12 = jnp.concatenate([p["mri_b"], p["dna_b"]]).astype(f32)   # (12,)
    b_gate = b_feat12 @ w_diff + b_diff

    # One (8, 128) f32 slab (= exactly one vreg):
    #   row 0        : feature bias [mri_b(6) | dna_b(6) | gate_bias(1) | 0]
    #   rows 1..6    : packed fc2 head weight [fc2_mri(4) | fc2_dna(7) | 0]
    #   row 7        : packed fc2 head bias   [fc2_mri_b  | fc2_dna_b  | 0]
    slab = jnp.zeros((8, 128), f32)
    slab = slab.at[0, 0:2 * FEATURE_DIM].set(b_feat12)
    slab = slab.at[0, 2 * FEATURE_DIM].set(b_gate)
    slab = slab.at[1:1 + FEATURE_DIM, 0:MRI_OUT_DIM].set(
        p["fc2_mri_w"].T.astype(f32))
    slab = slab.at[1:1 + FEATURE_DIM,
                   MRI_OUT_DIM:MRI_OUT_DIM + DNA_OUT_DIM].set(
        p["fc2_dna_w"].T.astype(f32))
    slab = slab.at[1 + FEATURE_DIM, 0:MRI_OUT_DIM].set(
        p["fc2_mri_b"].astype(f32))
    slab = slab.at[1 + FEATURE_DIM,
                   MRI_OUT_DIM:MRI_OUT_DIM + DNA_OUT_DIM].set(
        p["fc2_dna_b"].astype(f32))
    return wfeat_mri, wfeat_dna, slab


def _round_up(x, m):
    return ((x + m - 1) // m) * m


def multimodal_forward(mri_input, dna_input, p, *, bt_max=BT_MAX):
    f32 = jnp.float32
    B = mri_input.shape[0]
    mri_x = mri_input.reshape(B, -1).astype(f32)     # (B, MRI_FLAT)
    dna_x = dna_input.astype(f32)                    # (B, SEQ)
    mri_flat = mri_x.shape[1]
    seq = dna_x.shape[1]

    wfeat_mri, wfeat_dna, slab = _pack_params(p)
    assert wfeat_mri.shape[0] == mri_flat and wfeat_dna.shape[0] == seq

    # Batch tiling: fixed large tile + cdiv grid (partial last block handled by the
    # pipeline; no padded copies, no divisor search).  For B >= 16 force >= 2 grid
    # steps so the "parallel" axis shards across v7x's two TensorCores.
    if B >= 16:
        bt = min(bt_max, _round_up(pl.cdiv(B, 2), 8))
    else:
        bt = B                        # single block; block dims equal full array dims
    grid = (pl.cdiv(B, bt),)

    out_mri, out_dna = pl.pallas_call(
        multimodal_kernel,
        out_shape=(jax.ShapeDtypeStruct((B, MRI_OUT_DIM), f32),
                   jax.ShapeDtypeStruct((B, DNA_OUT_DIM), f32)),
        grid=grid,
        in_specs=[
            pl.BlockSpec((bt, mri_flat), lambda i: (i, 0)),       # MRI activations
            pl.BlockSpec((bt, seq), lambda i: (i, 0)),            # DNA activations
            pl.BlockSpec((mri_flat, FEAT_COLS), lambda i: (0, 0)),  # fused MRI weight
            pl.BlockSpec((seq, FEAT_COLS), lambda i: (0, 0)),       # fused DNA weight
            pl.BlockSpec((8, 128), lambda i: (0, 0)),               # bias/head slab
        ],
        out_specs=[
            pl.BlockSpec((bt, MRI_OUT_DIM), lambda i: (i, 0)),
            pl.BlockSpec((bt, DNA_OUT_DIM), lambda i: (i, 0)),
        ],
        compiler_params=pltpu.CompilerParams(
            dimension_semantics=("parallel",),
            vmem_limit_bytes=VMEM_LIMIT_BYTES),
    )(mri_x, dna_x, wfeat_mri, wfeat_dna, slab)

    return out_mri, out_dna


def reference_forward(mri_input, dna_input, p):
    """Pure-JAX reference implementing the full MultiheadAttention path."""
    B = mri_input.shape[0]
    mri_f = mri_input.reshape(B, -1) @ p["mri_w"].T + p["mri_b"]
    dna_f = dna_input @ p["dna_w"].T + p["dna_b"]
    x = jnp.concatenate([mri_f, dna_f], axis=1)[:, None, :]          # (B, 1, 12)

    wq, wk, wv = jnp.split(p["in_proj_w"], 3, axis=0)
    bq, bk, bv = jnp.split(p["in_proj_b"], 3, axis=0)
    q = x @ wq.T + bq
    k = x @ wk.T + bk
    v = x @ wv.T + bv
    qh = q.reshape(B, 1, NUM_HEADS, HEAD_DIM).transpose(0, 2, 1, 3)
    kh = k.reshape(B, 1, NUM_HEADS, HEAD_DIM).transpose(0, 2, 1, 3)
    vh = v.reshape(B, 1, NUM_HEADS, HEAD_DIM).transpose(0, 2, 1, 3)
    s = (qh @ kh.transpose(0, 1, 3, 2)) / jnp.sqrt(jnp.float32(HEAD_DIM))
    a = jax.nn.softmax(s, axis=-1)
    ctx = (a @ vh).transpose(0, 2, 1, 3).reshape(B, 1, EMBED_DIM)
    attn = (ctx @ p["out_proj_w"].T + p["out_proj_b"])[:, 0, :]

    gates = jax.nn.softmax(attn @ p["gate_w"].T + p["gate_b"], axis=1)
    combined = gates[:, 0:1] * mri_f + gates[:, 1:2] * dna_f
    mri_out = combined @ p["fc2_mri_w"].T + p["fc2_mri_b"]
    dna_out = combined @ p["fc2_dna_w"].T + p["fc2_dna_b"]
    return mri_out, dna_out


def xavier_uniform(key, shape):
    fan_out, fan_in = shape
    bound = (6.0 / (fan_in + fan_out)) ** 0.5
    return jax.random.uniform(key, shape, jnp.float32, -bound, bound)


if __name__ == "__main__":
    key = jax.random.PRNGKey(0)
    keys = jax.random.split(key, 16)

    B, C, H, W = 2, 4, 16, 16      # MRI: NCHW
    SEQ = 8                        # DNA feature length
    MRI_FLAT = C * H * W

    params = {
        # Synthetic expert models (external sub-models in the PyTorch code).
        "mri_w": xavier_uniform(keys[0], (FEATURE_DIM, MRI_FLAT)),
        "mri_b": 0.01 * jnp.arange(FEATURE_DIM, dtype=jnp.float32),
        "dna_w": xavier_uniform(keys[1], (FEATURE_DIM, SEQ)),
        "dna_b": 0.02 * jnp.arange(FEATURE_DIM, dtype=jnp.float32),
        # nn.MultiheadAttention(embed_dim=12, num_heads=6)
        "in_proj_w": xavier_uniform(keys[2], (3 * EMBED_DIM, EMBED_DIM)),
        "in_proj_b": jax.random.normal(keys[3], (3 * EMBED_DIM,), jnp.float32) * 0.05,
        "out_proj_w": xavier_uniform(keys[4], (EMBED_DIM, EMBED_DIM)),
        "out_proj_b": jax.random.normal(keys[5], (EMBED_DIM,), jnp.float32) * 0.05,
        # fc_gate / fc2_mri / fc2_dna (xavier_uniform per the module's __init__)
        "gate_w": xavier_uniform(keys[6], (2, EMBED_DIM)),
        "gate_b": jax.random.normal(keys[7], (2,), jnp.float32) * 0.05,
        "fc2_mri_w": xavier_uniform(keys[8], (4, FEATURE_DIM)),
        "fc2_mri_b": jax.random.normal(keys[9], (4,), jnp.float32) * 0.05,
        "fc2_dna_w": xavier_uniform(keys[10], (7, FEATURE_DIM)),
        "fc2_dna_b": jax.random.normal(keys[11], (7,), jnp.float32) * 0.05,
    }

    mri_input = jax.random.normal(keys[12], (B, C, H, W), jnp.float32)
    dna_input = jax.random.normal(keys[13], (B, SEQ), jnp.float32)

    mri_out, dna_out = multimodal_forward(mri_input, dna_input, params)
    jax.block_until_ready((mri_out, dna_out))

    ref_mri, ref_dna = reference_forward(mri_input, dna_input, params)
    assert mri_out.shape == (B, 4) and dna_out.shape == (B, 7)
    # Wrapper-side weight-chain fusion changes rounding slightly vs the
    # step-by-step reference -> modestly relaxed tolerance.
    assert jnp.allclose(mri_out, ref_mri, atol=1e-4, rtol=1e-4)
    assert jnp.allclose(dna_out, ref_dna, atol=1e-4, rtol=1e-4)

    print("KERNEL_OK")
</pallas_src>

<mosaic_0001>
module attributes {stable_mosaic.version = 11 : i64} {
  func.func @multimodal_kernel(%arg0: i32, %arg1: memref<2x1024xf32, #tpu.memory_space<vmem>>, %arg2: memref<2x8xf32, #tpu.memory_space<vmem>>, %arg3: memref<1024x16xf32, #tpu.memory_space<vmem>>, %arg4: memref<8x16xf32, #tpu.memory_space<vmem>>, %arg5: memref<8x128xf32, #tpu.memory_space<vmem>>, %arg6: memref<2x4xf32, #tpu.memory_space<vmem>>, %arg7: memref<2x7xf32, #tpu.memory_space<vmem>>) attributes {dimension_semantics = [#tpu.dimension_semantics<parallel>], iteration_bounds = array<i64: 1>, scalar_prefetch = 0 : i64, scratch_operands = 0 : i64, tpu.core_type = #tpu.core_type<tc>, window_params = [{transform_indices = @transform_0, window_bounds = array<i64: 2, 1024>}, {transform_indices = @transform_1, window_bounds = array<i64: 2, 8>}, {pipeline_mode = #tpu.pipeline_mode<synchronous>, transform_indices = @transform_2, window_bounds = array<i64: 1024, 16>}, {pipeline_mode = #tpu.pipeline_mode<synchronous>, transform_indices = @transform_3, window_bounds = array<i64: 8, 16>}, {pipeline_mode = #tpu.pipeline_mode<synchronous>, transform_indices = @transform_4, window_bounds = array<i64: 8, 128>}, {transform_indices = @transform_5, window_bounds = array<i64: 2, 4>}, {transform_indices = @transform_6, window_bounds = array<i64: 2, 7>}]} {
    %c0 = arith.constant 0 : index
    %c0_0 = arith.constant 0 : index
    %0 = vector.load %arg1[%c0, %c0_0] : memref<2x1024xf32, #tpu.memory_space<vmem>>, vector<2x1024xf32>
    %c0_1 = arith.constant 0 : index
    %c0_2 = arith.constant 0 : index
    %1 = vector.load %arg3[%c0_1, %c0_2] : memref<1024x16xf32, #tpu.memory_space<vmem>>, vector<1024x16xf32>
    %cst = arith.constant dense<0.000000e+00> : vector<2x16xf32>
    %2 = tpu.matmul %0, %1, %cst {dimension_numbers = #tpu.dot_dimension_numbers<[1], [0], [0], [1], [0, 0, 1, 1], [], []>} : vector<2x1024xf32>, vector<1024x16xf32>, vector<2x16xf32> -> vector<2x16xf32>
    %c0_3 = arith.constant 0 : index
    %c0_4 = arith.constant 0 : index
    %3 = vector.load %arg2[%c0_3, %c0_4] : memref<2x8xf32, #tpu.memory_space<vmem>>, vector<2x8xf32>
    %c0_5 = arith.constant 0 : index
    %c0_6 = arith.constant 0 : index
    %4 = vector.load %arg4[%c0_5, %c0_6] : memref<8x16xf32, #tpu.memory_space<vmem>>, vector<8x16xf32>
    %cst_7 = arith.constant dense<0.000000e+00> : vector<2x16xf32>
    %5 = tpu.matmul %3, %4, %cst_7 {dimension_numbers = #tpu.dot_dimension_numbers<[1], [0], [0], [1], [0, 0, 1, 1], [], []>} : vector<2x8xf32>, vector<8x16xf32>, vector<2x16xf32> -> vector<2x16xf32>
    %6 = arith.addf %2, %5 : vector<2x16xf32>
    %c0_8 = arith.constant 0 : index
    %c0_9 = arith.constant 0 : index
    %7 = vector.load %arg5[%c0_8, %c0_9] : memref<8x128xf32, #tpu.memory_space<vmem>>, vector<1x16xf32>
    %8 = vector.broadcast %7 : vector<1x16xf32> to vector<2x16xf32>
    %9 = arith.addf %6, %8 : vector<2x16xf32>
    %10 = vector.extract_strided_slice %9 {offsets = [0, 0], sizes = [2, 6], strides = [1, 1]} : vector<2x16xf32> to vector<2x6xf32>
    %11 = vector.extract_strided_slice %9 {offsets = [0, 6], sizes = [2, 6], strides = [1, 1]} : vector<2x16xf32> to vector<2x6xf32>
    %12 = vector.extract_strided_slice %9 {offsets = [0, 12], sizes = [2, 1], strides = [1, 1]} : vector<2x16xf32> to vector<2x1xf32>
    %13 = math.exp %12 : vector<2x1xf32>
    %cst_10 = arith.constant 1.000000e+00 : f32
    %14 = vector.broadcast %cst_10 : f32 to vector<2x1xf32>
    %15 = arith.addf %14, %13 : vector<2x1xf32>
    %16 = tpu.reciprocal %15 : vector<2x1xf32> -> vector<2x1xf32>
    %17 = vector.broadcast %16 : vector<2x1xf32> to vector<2x6xf32>
    %18 = arith.mulf %17, %10 : vector<2x6xf32>
    %cst_11 = arith.constant 1.000000e+00 : f32
    %19 = vector.broadcast %cst_11 : f32 to vector<2x1xf32>
    %20 = arith.subf %19, %16 : vector<2x1xf32>
    %21 = vector.broadcast %20 : vector<2x1xf32> to vector<2x6xf32>
    %22 = arith.mulf %21, %11 : vector<2x6xf32>
    %23 = arith.addf %18, %22 : vector<2x6xf32>
    %c1 = arith.constant 1 : index
    %c0_12 = arith.constant 0 : index
    %24 = vector.load %arg5[%c1, %c0_12] : memref<8x128xf32, #tpu.memory_space<vmem>>, vector<6x16xf32>
    %cst_13 = arith.constant dense<0.000000e+00> : vector<2x16xf32>
    %25 = tpu.matmul %23, %24, %cst_13 {dimension_numbers = #tpu.dot_dimension_numbers<[1], [0], [0], [1], [0, 0, 1, 1], [], []>} : vector<2x6xf32>, vector<6x16xf32>, vector<2x16xf32> -> vector<2x16xf32>
    %c7 = arith.constant 7 : index
    %c0_14 = arith.constant 0 : index
    %26 = vector.load %arg5[%c7, %c0_14] : memref<8x128xf32, #tpu.memory_space<vmem>>, vector<1x16xf32>
    %27 = vector.broadcast %26 : vector<1x16xf32> to vector<2x16xf32>
    %28 = arith.addf %25, %27 : vector<2x16xf32>
    %29 = vector.extract_strided_slice %28 {offsets = [0, 0], sizes = [2, 4], strides = [1, 1]} : vector<2x16xf32> to vector<2x4xf32>
    %c0_15 = arith.constant 0 : index
    %c0_16 = arith.constant 0 : index
    %30 = vector.load %arg6[%c0_15, %c0_16] : memref<2x4xf32, #tpu.memory_space<vmem>>, vector<2x4xf32>
    tpu.vector_store %arg6[%c0_15, %c0_16], %29 {strides = array<i32>} : memref<2x4xf32, #tpu.memory_space<vmem>>, vector<2x4xf32>,
    %31 = vector.extract_strided_slice %28 {offsets = [0, 4], sizes = [2, 7], strides = [1, 1]} : vector<2x16xf32> to vector<2x7xf32>
    %c0_17 = arith.constant 0 : index
    %c0_18 = arith.constant 0 : index
    %32 = vector.load %arg7[%c0_17, %c0_18] : memref<2x7xf32, #tpu.memory_space<vmem>>, vector<2x7xf32>
    tpu.vector_store %arg7[%c0_17, %c0_18], %31 {strides = array<i32>} : memref<2x7xf32, #tpu.memory_space<vmem>>, vector<2x7xf32>,
    return
  }
  func.func @transform_0(%arg0: i32) -> (i32, i32) {
    %c0_i32 = arith.constant 0 : i32
    %c0_i32_0 = arith.constant 0 : i32
    return %arg0, %c0_i32 : i32, i32
  }
  func.func @transform_1(%arg0: i32) -> (i32, i32) {
    %c0_i32 = arith.constant 0 : i32
    %c0_i32_0 = arith.constant 0 : i32
    return %arg0, %c0_i32 : i32, i32
  }
  func.func @transform_2(%arg0: i32) -> (i32, i32) {
    %c0_i32 = arith.constant 0 : i32
    %c0_i32_0 = arith.constant 0 : i32
    %c0_i32_1 = arith.constant 0 : i32
    return %c0_i32, %c0_i32_0 : i32, i32
  }
  func.func @transform_3(%arg0: i32) -> (i32, i32) {
    %c0_i32 = arith.constant 0 : i32
    %c0_i32_0 = arith.constant 0 : i32
    %c0_i32_1 = arith.constant 0 : i32
    return %c0_i32, %c0_i32_0 : i32, i32
  }
  func.func @transform_4(%arg0: i32) -> (i32, i32) {
    %c0_i32 = arith.constant 0 : i32
    %c0_i32_0 = arith.constant 0 : i32
    %c0_i32_1 = arith.constant 0 : i32
    return %c0_i32, %c0_i32_0 : i32, i32
  }
  func.func @transform_5(%arg0: i32) -> (i32, i32) {
    %c0_i32 = arith.constant 0 : i32
    %c0_i32_0 = arith.constant 0 : i32
    return %arg0, %c0_i32 : i32, i32
  }
  func.func @transform_6(%arg0: i32) -> (i32, i32) {
    %c0_i32 = arith.constant 0 : i32
    %c0_i32_0 = arith.constant 0 : i32
    return %arg0, %c0_i32 : i32, i32
  }
}

</mosaic_0001>

<llo_original>
// kernel: tpu_custom_call.1
$region0: #{tpu_custom_call.1}
  #allocation0 [shape = 'u32[]', space=smem, size = 0x4, offset = 0x4, fixed_abs, tag = 'smem constant byte address 0x4 - core index']
  #allocation1 [shape = 'u32[72,128]{1,0:T(1,128)}', space=vmem, size = 0x9000, scoped, tag = 'internal scratch']
  %s0 = inlined_call_operand.vmem [shape: f32[2,1024], index: 0, kind: input, shape index: {}]
  %s1 = inlined_call_operand.vmem [shape: f32[2,8], index: 1, kind: input, shape index: {}]
  %s2 = inlined_call_operand.vmem [shape: f32[1024,16], index: 2, kind: input, shape index: {}]
  %s3 = inlined_call_operand.vmem [shape: f32[8,16], index: 3, kind: input, shape index: {}]
  %s4 = inlined_call_operand.vmem [shape: f32[8,128], index: 4, kind: input, shape index: {}]
  %s5 = inlined_call_operand.hbm [shape: f32[2,4], index: 5, kind: output, shape index: {0}]
  %s6 = inlined_call_operand.hbm [shape: f32[2,7], index: 6, kind: output, shape index: {1}]
  %7 = xla_tuple %s5, %s6
  %s8 = sld [smem:[#allocation0]]
  $region38: #{tpu_custom_call.1} parent=0
    _
  %s10 = ssub.s32 1, %s8
  %s11 = scalar_select 0, %s10, %s8
  $region1: #{tpu_custom_call.1} parent=0
    #allocation2 [shape = 'u8[1024]{0}', space=vmem, size = 0x400, scoped, tag = 'output window, operand 0, single buffered']
    #allocation3 [shape = 's32[1]{0}', space=sflag, size = 0x4, scoped, tag = 'scoped memory for tpu_custom_call.1']
    #allocation4 [shape = 'u8[1024]{0}', space=vmem, size = 0x400, scoped, tag = 'output window, operand 1, single buffered']
    #allocation5 [shape = 's32[1]{0}', space=sflag, size = 0x4, scoped, tag = 'scoped memory for tpu_custom_call.1']
    %12 = vsyncpa [#allocation3], 0
    %13 = vsyncpa [#allocation5], 0
    // Predicated region
    $region2: #{tpu_custom_call.1} parent=1 // pred_check
      _
    $region3: #{tpu_custom_call.1} parent=1 // pred_check_branch
      %15 = sbr.rel (0) target = $region5
    $region4: #{tpu_custom_call.1} parent=1 // pred_region
      _
    $region5: #{tpu_custom_call.1} parent=1 // pred_fallthru
      _
    // Predicated region
    $region6: #{tpu_custom_call.1} parent=1 // pred_check
      _
    $region7: #{tpu_custom_call.1} parent=1 // pred_check_branch
      %17 = sbr.rel (0) target = $region9
    $region8: #{tpu_custom_call.1} parent=1 // pred_region
      _
    $region9: #{tpu_custom_call.1} parent=1 // pred_fallthru
      _
    // Predicated region
    $region10: #{tpu_custom_call.1} parent=1 // pred_check
      _
    $region11: #{tpu_custom_call.1} parent=1 // pred_check_branch
      %19 = sbr.rel (0) target = $region13
    $region12: #{tpu_custom_call.1} parent=1 // pred_region
      _
    $region13: #{tpu_custom_call.1} parent=1 // pred_fallthru
      _
    // Predicated region
    $region14: #{tpu_custom_call.1} parent=1 // pred_check
      _
    $region15: #{tpu_custom_call.1} parent=1 // pred_check_branch
      %21 = sbr.rel (0) target = $region17
    $region16: #{tpu_custom_call.1} parent=1 // pred_region
      _
    $region17: #{tpu_custom_call.1} parent=1 // pred_fallthru
      _
    // Predicated region
    $region18: #{tpu_custom_call.1} parent=1 // pred_check
      _
    $region19: #{tpu_custom_call.1} parent=1 // pred_check_branch
      %23 = sbr.rel (0) target = $region21
    $region20: #{tpu_custom_call.1} parent=1 // pred_region
      _
    $region21: #{tpu_custom_call.1} parent=1 // pred_fallthru
      _
    %v24 = vld [vmem:[%s0] sm:$0xff]
    %v25 = vld [vmem:[%s0 + $0x8] sm:$0xff]
    %v26 = vld [vmem:[%s2] sm:$0xff]
    %v27 = vld [vmem:[%s2 + $0x8] sm:$0xff]
    %v28 = vld [vmem:[%s2 + $0x10] sm:$0xff]
    %v29 = vld [vmem:[%s2 + $0x18] sm:$0xff]
    %v30 = vld [vmem:[%s2 + $0x20] sm:$0xff]
    %v31 = vld [vmem:[%s2 + $0x28] sm:$0xff]
    %v32 = vld [vmem:[%s2 + $0x30] sm:$0xff]
    %v33 = vld [vmem:[%s2 + $0x38] sm:$0xff]
    %v34 = vld [vmem:[%s2 + $0x40] sm:$0xff]
    %v35 = vld [vmem:[%s2 + $0x48] sm:$0xff]
    %v36 = vld [vmem:[%s2 + $0x50] sm:$0xff]
    %v37 = vld [vmem:[%s2 + $0x58] sm:$0xff]
    %v38 = vld [vmem:[%s2 + $0x60] sm:$0xff]
    %v39 = vld [vmem:[%s2 + $0x68] sm:$0xff]
    %v40 = vld [vmem:[%s2 + $0x70] sm:$0xff]
    %v41 = vld [vmem:[%s2 + $0x78] sm:$0xff]
    %v42 = vld [vmem:[%s2 + $0x80] sm:$0xff]
    %v43 = vld [vmem:[%s2 + $0x88] sm:$0xff]
    %v44 = vld [vmem:[%s2 + $0x90] sm:$0xff]
    %v45 = vld [vmem:[%s2 + $0x98] sm:$0xff]
    %v46 = vld [vmem:[%s2 + $0xa0] sm:$0xff]
    %v47 = vld [vmem:[%s2 + $0xa8] sm:$0xff]
    %v48 = vld [vmem:[%s2 + $0xb0] sm:$0xff]
    %v49 = vld [vmem:[%s2 + $0xb8] sm:$0xff]
    %v50 = vld [vmem:[%s2 + $0xc0] sm:$0xff]
    %v51 = vld [vmem:[%s2 + $0xc8] sm:$0xff]
    %v52 = vld [vmem:[%s2 + $0xd0] sm:$0xff]
    %v53 = vld [vmem:[%s2 + $0xd8] sm:$0xff]
    %v54 = vld [vmem:[%s2 + $0xe0] sm:$0xff]
    %v55 = vld [vmem:[%s2 + $0xe8] sm:$0xff]
    %v56 = vld [vmem:[%s2 + $0xf0] sm:$0xff]
    %v57 = vld [vmem:[%s2 + $0xf8] sm:$0xff]
    %v58 = vld [vmem:[%s2 + $0x100] sm:$0xff]
    %v59 = vld [vmem:[%s2 + $0x108] sm:$0xff]
    %v60 = vld [vmem:[%s2 + $0x110] sm:$0xff]
    %v61 = vld [vmem:[%s2 + $0x118] sm:$0xff]
    %v62 = vld [vmem:[%s2 + $0x120] sm:$0xff]
    %v63 = vld [vmem:[%s2 + $0x128] sm:$0xff]
    %v64 = vld [vmem:[%s2 + $0x130] sm:$0xff]
    %v65 = vld [vmem:[%s2 + $0x138] sm:$0xff]
    %v66 = vld [vmem:[%s2 + $0x140] sm:$0xff]
    %v67 = vld [vmem:[%s2 + $0x148] sm:$0xff]
    %v68 = vld [vmem:[%s2 + $0x150] sm:$0xff]
    %v69 = vld [vmem:[%s2 + $0x158] sm:$0xff]
    %v70 = vld [vmem:[%s2 + $0x160] sm:$0xff]
    %v71 = vld [vmem:[%s2 + $0x168] sm:$0xff]
    %v72 = vld [vmem:[%s2 + $0x170] sm:$0xff]
    %v73 = vld [vmem:[%s2 + $0x178] sm:$0xff]
    %v74 = vld [vmem:[%s2 + $0x180] sm:$0xff]
    %v75 = vld [vmem:[%s2 + $0x188] sm:$0xff]
    %v76 = vld [vmem:[%s2 + $0x190] sm:$0xff]
    %v77 = vld [vmem:[%s2 + $0x198] sm:$0xff]
    %v78 = vld [vmem:[%s2 + $0x1a0] sm:$0xff]
    %v79 = vld [vmem:[%s2 + $0x1a8] sm:$0xff]
    %v80 = vld [vmem:[%s2 + $0x1b0] sm:$0xff]
    %v81 = vld [vmem:[%s2 + $0x1b8] sm:$0xff]
    %v82 = vld [vmem:[%s2 + $0x1c0] sm:$0xff]
    %v83 = vld [vmem:[%s2 + $0x1c8] sm:$0xff]
    %v84 = vld [vmem:[%s2 + $0x1d0] sm:$0xff]
    %v85 = vld [vmem:[%s2 + $0x1d8] sm:$0xff]
    %v86 = vld [vmem:[%s2 + $0x1e0] sm:$0xff]
    %v87 = vld [vmem:[%s2 + $0x1e8] sm:$0xff]
    %v88 = vld [vmem:[%s2 + $0x1f0] sm:$0xff]
    %v89 = vld [vmem:[%s2 + $0x1f8] sm:$0xff]
    %v90 = vld [vmem:[%s2 + $0x200] sm:$0xff]
    %v91 = vld [vmem:[%s2 + $0x208] sm:$0xff]
    %v92 = vld [vmem:[%s2 + $0x210] sm:$0xff]
    %v93 = vld [vmem:[%s2 + $0x218] sm:$0xff]
    %v94 = vld [vmem:[%s2 + $0x220] sm:$0xff]
    %v95 = vld [vmem:[%s2 + $0x228] sm:$0xff]
    %v96 = vld [vmem:[%s2 + $0x230] sm:$0xff]
    %v97 = vld [vmem:[%s2 + $0x238] sm:$0xff]
    %v98 = vld [vmem:[%s2 + $0x240] sm:$0xff]
    %v99 = vld [vmem:[%s2 + $0x248] sm:$0xff]
    %v100 = vld [vmem:[%s2 + $0x250] sm:$0xff]
    %v101 = vld [vmem:[%s2 + $0x258] sm:$0xff]
    %v102 = vld [vmem:[%s2 + $0x260] sm:$0xff]
    %v103 = vld [vmem:[%s2 + $0x268] sm:$0xff]
    %v104 = vld [vmem:[%s2 + $0x270] sm:$0xff]
    %v105 = vld [vmem:[%s2 + $0x278] sm:$0xff]
    %v106 = vld [vmem:[%s2 + $0x280] sm:$0xff]
    %v107 = vld [vmem:[%s2 + $0x288] sm:$0xff]
    %v108 = vld [vmem:[%s2 + $0x290] sm:$0xff]
    %v109 = vld [vmem:[%s2 + $0x298] sm:$0xff]
    %v110 = vld [vmem:[%s2 + $0x2a0] sm:$0xff]
    %v111 = vld [vmem:[%s2 + $0x2a8] sm:$0xff]
    %v112 = vld [vmem:[%s2 + $0x2b0] sm:$0xff]
    %v113 = vld [vmem:[%s2 + $0x2b8] sm:$0xff]
    %v114 = vld [vmem:[%s2 + $0x2c0] sm:$0xff]
    %v115 = vld [vmem:[%s2 + $0x2c8] sm:$0xff]
    %v116 = vld [vmem:[%s2 + $0x2d0] sm:$0xff]
    %v117 = vld [vmem:[%s2 + $0x2d8] sm:$0xff]
    %v118 = vld [vmem:[%s2 + $0x2e0] sm:$0xff]
    %v119 = vld [vmem:[%s2 + $0x2e8] sm:$0xff]
    %v120 = vld [vmem:[%s2 + $0x2f0] sm:$0xff]
    %v121 = vld [vmem:[%s2 + $0x2f8] sm:$0xff]
    %v122 = vld [vmem:[%s2 + $0x300] sm:$0xff]
    %v123 = vld [vmem:[%s2 + $0x308] sm:$0xff]
    %v124 = vld [vmem:[%s2 + $0x310] sm:$0xff]
    %v125 = vld [vmem:[%s2 + $0x318] sm:$0xff]
    %v126 = vld [vmem:[%s2 + $0x320] sm:$0xff]
    %v127 = vld [vmem:[%s2 + $0x328] sm:$0xff]
    %v128 = vld [vmem:[%s2 + $0x330] sm:$0xff]
    %v129 = vld [vmem:[%s2 + $0x338] sm:$0xff]
    %v130 = vld [vmem:[%s2 + $0x340] sm:$0xff]
    %v131 = vld [vmem:[%s2 + $0x348] sm:$0xff]
    %v132 = vld [vmem:[%s2 + $0x350] sm:$0xff]
    %v133 = vld [vmem:[%s2 + $0x358] sm:$0xff]
    %v134 = vld [vmem:[%s2 + $0x360] sm:$0xff]
    %v135 = vld [vmem:[%s2 + $0x368] sm:$0xff]
    %v136 = vld [vmem:[%s2 + $0x370] sm:$0xff]
    %v137 = vld [vmem:[%s2 + $0x378] sm:$0xff]
    %v138 = vld [vmem:[%s2 + $0x380] sm:$0xff]
    %v139 = vld [vmem:[%s2 + $0x388] sm:$0xff]
    %v140 = vld [vmem:[%s2 + $0x390] sm:$0xff]
    %v141 = vld [vmem:[%s2 + $0x398] sm:$0xff]
    %v142 = vld [vmem:[%s2 + $0x3a0] sm:$0xff]
    %v143 = vld [vmem:[%s2 + $0x3a8] sm:$0xff]
    %v144 = vld [vmem:[%s2 + $0x3b0] sm:$0xff]
    %v145 = vld [vmem:[%s2 + $0x3b8] sm:$0xff]
    %v146 = vld [vmem:[%s2 + $0x3c0] sm:$0xff]
    %v147 = vld [vmem:[%s2 + $0x3c8] sm:$0xff]
    %v148 = vld [vmem:[%s2 + $0x3d0] sm:$0xff]
    %v149 = vld [vmem:[%s2 + $0x3d8] sm:$0xff]
    %v150 = vld [vmem:[%s2 + $0x3e0] sm:$0xff]
    %v151 = vld [vmem:[%s2 + $0x3e8] sm:$0xff]
    %v152 = vld [vmem:[%s2 + $0x3f0] sm:$0xff]
    %v153 = vld [vmem:[%s2 + $0x3f8] sm:$0xff]
    %v154 = vld [vmem:[%s1] sm:$0x3]
    %v155 = vld [vmem:[%s3] sm:$0xff]
    %vm156 = vcmask 64512
    %v158 = vsel %vm156, %v154, 0
    %160 = vmatpush.msra.mxu0 0.0
    %161 = vmatpush.msra.mxu0 0.0
    %162 = vmatpush.msra.mxu0 0.0
    %163 = vmatpush.msra.mxu0 0.0
    %164 = vmatpush.msra.mxu0 0.0
    %165 = vmatpush.msra.mxu0 0.0
    %166 = vmatpush.msra.mxu0 0.0
    %167 = vmatpush.msra.mxu0 0.0
    %168 = vmatpush.msra.mxu0 0.0
    %169 = vmatpush.msra.mxu0 0.0
    %170 = vmatpush.msra.mxu0 0.0
    %171 = vmatpush.msra.mxu0 0.0
    %172 = vmatpush.msra.mxu0 0.0
    %173 = vmatpush.msra.mxu0 0.0
    %174 = vmatpush.msra.mxu0 0.0
    %175 = vmatpush.msra.mxu0 %v155
    %176 = vmatmul.f32.gmra.mxu0 %v158
    %v177 = vpop.f32.mrf.mxu0
    %v178 = vadd.f32 0.0, %v177
    %179 = vdwg.mxu0
    %182 = vst [vmem:[#allocation1] ss:$4 sm:$0xff] %v24
    %s183 = scalar_lea.vmem [#allocation1], 32
    %184 = vst [vmem:[%s183] ss:$4 sm:$0xff] %v25
    %v185 = vld.sshfl [vmem:[#allocation1] sm:$0xff pattern:$0x73625140]
    %v186 = vld.sshfl [vmem:[#allocation1 + $0x8] sm:$0xff pattern:$0x73625140]
    %v187 = vld.sshfl [vmem:[#allocation1 + $0x10] sm:$0xff pattern:$0x73625140]
    %v188 = vld.sshfl [vmem:[#allocation1 + $0x18] sm:$0xff pattern:$0x73625140]
    %v189 = vld.sshfl [vmem:[#allocation1 + $0x20] sm:$0xff pattern:$0x73625140]
    %v190 = vld.sshfl [vmem:[#allocation1 + $0x28] sm:$0xff pattern:$0x73625140]
    %v191 = vld.sshfl [vmem:[#allocation1 + $0x30] sm:$0xff pattern:$0x73625140]
    %v192 = vld.sshfl [vmem:[#allocation1 + $0x38] sm:$0xff pattern:$0x73625140]
    %201 = vmatpush.msra.mxu0 %v41
    %202 = vmatpush.msra.mxu0 %v40
    %203 = vmatpush.msra.mxu0 %v39
    %204 = vmatpush.msra.mxu0 %v38
    %205 = vmatpush.msra.mxu0 %v37
    %206 = vmatpush.msra.mxu0 %v36
    %207 = vmatpush.msra.mxu0 %v35
    %208 = vmatpush.msra.mxu0 %v34
    %209 = vmatpush.msra.mxu0 %v33
    %210 = vmatpush.msra.mxu0 %v32
    %211 = vmatpush.msra.mxu0 %v31
    %212 = vmatpush.msra.mxu0 %v30
    %213 = vmatpush.msra.mxu0 %v29
    %214 = vmatpush.msra.mxu0 %v28
    %215 = vmatpush.msra.mxu0 %v27
    %216 = vmatpush.msra.mxu0 %v26
    %217 = vmatmul.f32.gmra.mxu0 %v185
    %v218 = vpop.f32.mrf.mxu0
    %v219 = vadd.f32 %v178, %v218
    %220 = vdwg.mxu0
    %221 = vmatpush.msra.mxu0 %v57
    %222 = vmatpush.msra.mxu0 %v56
    %223 = vmatpush.msra.mxu0 %v55
    %224 = vmatpush.msra.mxu0 %v54
    %225 = vmatpush.msra.mxu0 %v53
    %226 = vmatpush.msra.mxu0 %v52
    %227 = vmatpush.msra.mxu0 %v51
    %228 = vmatpush.msra.mxu0 %v50
    %229 = vmatpush.msra.mxu0 %v49
    %230 = vmatpush.msra.mxu0 %v48
    %231 = vmatpush.msra.mxu0 %v47
    %232 = vmatpush.msra.mxu0 %v46
    %233 = vmatpush.msra.mxu0 %v45
    %234 = vmatpush.msra.mxu0 %v44
    %235 = vmatpush.msra.mxu0 %v43
    %236 = vmatpush.msra.mxu0 %v42
    %237 = vmatmul.f32.gmra.mxu0 %v186
    %v238 = vpop.f32.mrf.mxu0
    %v239 = vadd.f32 %v219, %v238
    %240 = vdwg.mxu0
    %241 = vmatpush.msra.mxu0 %v73
    %242 = vmatpush.msra.mxu0 %v72
    %243 = vmatpush.msra.mxu0 %v71
    %244 = vmatpush.msra.mxu0 %v70
    %245 = vmatpush.msra.mxu0 %v69
    %246 = vmatpush.msra.mxu0 %v68
    %247 = vmatpush.msra.mxu0 %v67
    %248 = vmatpush.msra.mxu0 %v66
    %249 = vmatpush.msra.mxu0 %v65
    %250 = vmatpush.msra.mxu0 %v64
    %251 = vmatpush.msra.mxu0 %v63
    %252 = vmatpush.msra.mxu0 %v62
    %253 = vmatpush.msra.mxu0 %v61
    %254 = vmatpush.msra.mxu0 %v60
    %255 = vmatpush.msra.mxu0 %v59
    %256 = vmatpush.msra.mxu0 %v58
    %257 = vmatmul.f32.gmra.mxu0 %v187
    %v258 = vpop.f32.mrf.mxu0
    %v259 = vadd.f32 %v239, %v258
    %260 = vdwg.mxu0
    %261 = vmatpush.msra.mxu0 %v89
    %262 = vmatpush.msra.mxu0 %v88
    %263 = vmatpush.msra.mxu0 %v87
    %264 = vmatpush.msra.mxu0 %v86
    %265 = vmatpush.msra.mxu0 %v85
    %266 = vmatpush.msra.mxu0 %v84
    %267 = vmatpush.msra.mxu0 %v83
    %268 = vmatpush.msra.mxu0 %v82
    %269 = vmatpush.msra.mxu0 %v81
    %270 = vmatpush.msra.mxu0 %v80
    %271 = vmatpush.msra.mxu0 %v79
    %272 = vmatpush.msra.mxu0 %v78
    %273 = vmatpush.msra.mxu0 %v77
    %274 = vmatpush.msra.mxu0 %v76
    %275 = vmatpush.msra.mxu0 %v75
    %276 = vmatpush.msra.mxu0 %v74
    %277 = vmatmul.f32.gmra.mxu0 %v188
    %v278 = vpop.f32.mrf.mxu0
    %v279 = vadd.f32 %v259, %v278
    %280 = vdwg.mxu0
    %281 = vmatpush.msra.mxu0 %v105
    %282 = vmatpush.msra.mxu0 %v104
    %283 = vmatpush.msra.mxu0 %v103
    %284 = vmatpush.msra.mxu0 %v102
    %285 = vmatpush.msra.mxu0 %v101
    %286 = vmatpush.msra.mxu0 %v100
    %287 = vmatpush.msra.mxu0 %v99
    %288 = vmatpush.msra.mxu0 %v98
    %289 = vmatpush.msra.mxu0 %v97
    %290 = vmatpush.msra.mxu0 %v96
    %291 = vmatpush.msra.mxu0 %v95
    %292 = vmatpush.msra.mxu0 %v94
    %293 = vmatpush.msra.mxu0 %v93
    %294 = vmatpush.msra.mxu0 %v92
    %295 = vmatpush.msra.mxu0 %v91
    %296 = vmatpush.msra.mxu0 %v90
    %297 = vmatmul.f32.gmra.mxu0 %v189
    %v298 = vpop.f32.mrf.mxu0
    %v299 = vadd.f32 %v279, %v298
    %300 = vdwg.mxu0
    %301 = vmatpush.msra.mxu0 %v121
    %302 = vmatpush.msra.mxu0 %v120
    %303 = vmatpush.msra.mxu0 %v119
    %304 = vmatpush.msra.mxu0 %v118
    %305 = vmatpush.msra.mxu0 %v117
    %306 = vmatpush.msra.mxu0 %v116
    %307 = vmatpush.msra.mxu0 %v115
    %308 = vmatpush.msra.mxu0 %v114
    %309 = vmatpush.msra.mxu0 %v113
    %310 = vmatpush.msra.mxu0 %v112
    %311 = vmatpush.msra.mxu0 %v111
    %312 = vmatpush.msra.mxu0 %v110
    %313 = vmatpush.msra.mxu0 %v109
    %314 = vmatpush.msra.mxu0 %v108
    %315 = vmatpush.msra.mxu0 %v107
    %316 = vmatpush.msra.mxu0 %v106
    %317 = vmatmul.f32.gmra.mxu0 %v190
    %v318 = vpop.f32.mrf.mxu0
    %v319 = vadd.f32 %v299, %v318
    %320 = vdwg.mxu0
    %321 = vmatpush.msra.mxu0 %v137
    %322 = vmatpush.msra.mxu0 %v136
    %323 = vmatpush.msra.mxu0 %v135
    %324 = vmatpush.msra.mxu0 %v134
    %325 = vmatpush.msra.mxu0 %v133
    %326 = vmatpush.msra.mxu0 %v132
    %327 = vmatpush.msra.mxu0 %v131
    %328 = vmatpush.msra.mxu0 %v130
    %329 = vmatpush.msra.mxu0 %v129
    %330 = vmatpush.msra.mxu0 %v128
    %331 = vmatpush.msra.mxu0 %v127
    %332 = vmatpush.msra.mxu0 %v126
    %333 = vmatpush.msra.mxu0 %v125
    %334 = vmatpush.msra.mxu0 %v124
    %335 = vmatpush.msra.mxu0 %v123
    %336 = vmatpush.msra.mxu0 %v122
    %337 = vmatmul.f32.gmra.mxu0 %v191
    %v338 = vpop.f32.mrf.mxu0
    %v339 = vadd.f32 %v319, %v338
    %340 = vdwg.mxu0
    %341 = vmatpush.msra.mxu0 %v153
    %342 = vmatpush.msra.mxu0 %v152
    %343 = vmatpush.msra.mxu0 %v151
    %344 = vmatpush.msra.mxu0 %v150
    %345 = vmatpush.msra.mxu0 %v149
    %346 = vmatpush.msra.mxu0 %v148
    %347 = vmatpush.msra.mxu0 %v147
    %348 = vmatpush.msra.mxu0 %v146
    %349 = vmatpush.msra.mxu0 %v145
    %350 = vmatpush.msra.mxu0 %v144
    %351 = vmatpush.msra.mxu0 %v143
    %352 = vmatpush.msra.mxu0 %v142
    %353 = vmatpush.msra.mxu0 %v141
    %354 = vmatpush.msra.mxu0 %v140
    %355 = vmatpush.msra.mxu0 %v139
    %356 = vmatpush.msra.mxu0 %v138
    %357 = vmatmul.f32.gmra.mxu0 %v192
    %v358 = vpop.f32.mrf.mxu0
    %v359 = vadd.f32 %v339, %v358
    %360 = vdwg.mxu0
    %v361 = vld [vmem:[%s4] sm:$0x1]
    %v362 = vperm.slane %v361, 0
    %v363 = vadd.f32 %v359, %v362
    %v364 = vmul.f32 %v363, 1.442695
    %v365 = vpow.pop %v364
    %v366 = vadd.f32 %v365, 1.0
    %v367 = vrcp.pop %v366
    %v368 = vmul.f32 %v366, %v367
    %v369 = vsub.f32 1.0, %v368
    %v370 = vmul.f32 %v367, %v369
    %v371 = vadd.f32 %v367, %v370
    %vm372 = vweird.f32 %v366
    %vm373 = vweird.f32 %v367
    %vm374 = vmor %vm372, %vm373
    %v375 = vsel %vm374, %v367, %v371
    %v376 = vand.u32 2147483647, %v366
    %vm377 = vcmp.eq.f32.partialorder %v376, 8.507059e+37
    %v378 = vand.u32 %v366, 2147483648
    %v379 = vor.u32 1.1754944e-38, %v378
    %v380 = vsel %vm377, %v379, %v375
    %382 = vset.pattern.permute.xlu0 12
    %383 = vperm.xlu0 %382, %v380
    %v384 = vpop.permute.xlu0 %383
    %v386 = vmul.f32 %v384, %v363
    %v387 = vsub.f32 1.0, %v380
    %389 = vset.pattern.permute.xlu0 12
    %390 = vperm.xlu0 %389, %v387
    %v391 = vpop.permute.xlu0 %390
    %v393 = vmul.f32 %v391, %v363
    %395 = vrot.lane.b32.xlu0 %v393, 122
    %v396 = vpop.permute.xlu0 %395
    %v398 = vadd.f32 %v386, %v396
    %v399 = vld [vmem:[%s4 + $0x1] sm:$0x3f]
    %v400 = vld [vmem:[%s4 + $0x7] sm:$0x1]
    %v401 = vperm.slane %v400, 0
    %vm402 = vcmask 48128
    %v404 = vsel %vm402, %v398, 0
    %vm406 = vcmask 1045504
    %v408 = vsel %vm406, %v399, 0
    %410 = vmatpush.msra.mxu0 0.0
    %411 = vmatpush.msra.mxu0 0.0
    %412 = vmatpush.msra.mxu0 0.0
    %413 = vmatpush.msra.mxu0 0.0
    %414 = vmatpush.msra.mxu0 0.0
    %415 = vmatpush.msra.mxu0 0.0
    %416 = vmatpush.msra.mxu0 0.0
    %417 = vmatpush.msra.mxu0 0.0
    %418 = vmatpush.msra.mxu0 0.0
    %419 = vmatpush.msra.mxu0 0.0
    %420 = vmatpush.msra.mxu0 0.0
    %421 = vmatpush.msra.mxu0 0.0
    %422 = vmatpush.msra.mxu0 0.0
    %423 = vmatpush.msra.mxu0 0.0
    %424 = vmatpush.msra.mxu0 0.0
    %425 = vmatpush.msra.mxu0 %v408
    %426 = vmatmul.f32.gmra.mxu0 %v404
    %v427 = vpop.f32.mrf.mxu0
    %v428 = vadd.f32 %v401, %v427
    %429 = vdwg.mxu0
    %vm430 = vcmask 25600
    %431 = vst.msk [vmem:[#allocation2] sm:$0x3] %vm430, %v428
    %433 = vrot.lane.b32.xlu0 %v428, 124
    %v434 = vpop.permute.xlu0 %433
    %vm436 = vcmask 50176
    %437 = vst.msk [vmem:[#allocation4] sm:$0x3] %vm436, %v434
    // Predicated region
    $region22: #{tpu_custom_call.1} parent=1 // pred_check
      _
    $region23: #{tpu_custom_call.1} parent=1 // pred_check_branch
      %439 = sbr.rel (0) target = $region25
    $region24: #{tpu_custom_call.1} parent=1 // pred_region
      %441 = vsyncadd [#allocation3], 0
      %s443 = sshll.u32 [#allocation2], 4
      %s444 = int_to_ptr.vmem [resolvable:$true] %s443
      %s445 = sshll.u32 %s5, 4
      %s446 = int_to_ptr.hbm [resolvable:$true] %s445
      %448 = dma.vmem_to_hbm [thread:$0]  %s444, 32, %s446, [#allocation3]
    $region25: #{tpu_custom_call.1} parent=1 // pred_fallthru
      _
    // Predicated region
    $region26: #{tpu_custom_call.1} parent=1 // pred_check
      _
    $region27: #{tpu_custom_call.1} parent=1 // pred_check_branch
      %450 = sbr.rel (0) target = $region29
    $region28: #{tpu_custom_call.1} parent=1 // pred_region
      %452 = vsyncadd [#allocation5], 0
      %s454 = sshll.u32 [#allocation4], 4
      %s455 = int_to_ptr.vmem [resolvable:$true] %s454
      %s456 = sshll.u32 %s6, 4
      %s457 = int_to_ptr.hbm [resolvable:$true] %s456
      %459 = dma.vmem_to_hbm [thread:$0]  %s455, 32, %s457, [#allocation5]
    $region29: #{tpu_custom_call.1} parent=1 // pred_fallthru
      _
    // Predicated region
    $region30: #{tpu_custom_call.1} parent=1 // pred_check
      _
    $region31: #{tpu_custom_call.1} parent=1 // pred_check_branch
      %461 = sbr.rel (0) target = $region33
    $region32: #{tpu_custom_call.1} parent=1 // pred_region
      %463 = dma.done [#allocation3], 32
    $region33: #{tpu_custom_call.1} parent=1 // pred_fallthru
      _
    // Predicated region
    $region34: #{tpu_custom_call.1} parent=1 // pred_check
      _
    $region35: #{tpu_custom_call.1} parent=1 // pred_check_branch
      %465 = sbr.rel (0) target = $region37
    $region36: #{tpu_custom_call.1} parent=1 // pred_region
      %467 = dma.done [#allocation5], 32
    $region37: #{tpu_custom_call.1} parent=1 // pred_fallthru
      _
    %468 = vsyncpa [#allocation3], 1
    %469 = vsyncpa [#allocation5], 1

</llo_original>
